<compile_context>
chip_gen: v5e
topology: v5e:2x2
jax: 0.10.0
libtpu: 0.0.40
codegen_flags: <defaults>
</compile_context>

<pallas_src>
import jax
import jax.numpy as jnp
from jax.experimental import pallas as pl
from jax.experimental.pallas import tpu as pltpu

INPUT_SIZE = 4
HIDDEN = 128
OUTPUT_SIZE = 2

IN_PAD = 8          # input features padded 4 -> 8 (sublane multiple)
TM_MAX = 512        # max batch rows per grid step (VMEM-safe on v5e/v6e/v7x)

# Row offsets inside the packed (288, 128) parameter buffer (all 8-row aligned).
W1_OFF, W1_ROWS = 0, IN_PAD          # rows   0..7   (rows 4..7 zero)
B1_OFF, B1_ROWS = 8, 8               # rows   8..15  (row 8 real, rest zero)
W2_OFF, W2_ROWS = 16, HIDDEN         # rows  16..143
B2_OFF, B2_ROWS = 144, 8             # rows 144..151
W3_OFF, W3_ROWS = 152, HIDDEN        # rows 152..279 (cols 2..127 zero)
B3_OFF, B3_ROWS = 280, 8             # rows 280..287 (cols 2..127 zero)
PACK_ROWS = 288


def _round_up(n, m):
    return ((n + m - 1) // m) * m


def mlp_kernel(x_ref, p_ref, o_ref):
    # Static, 8-aligned slices of the packed parameter buffer (zero-cost views).
    w1 = p_ref[W1_OFF:W1_OFF + W1_ROWS, :]      # (8, 128)
    b1 = p_ref[B1_OFF:B1_OFF + 1, :]            # (1, 128)
    w2 = p_ref[W2_OFF:W2_OFF + W2_ROWS, :]      # (128, 128)
    b2 = p_ref[B2_OFF:B2_OFF + 1, :]            # (1, 128)
    w3 = p_ref[W3_OFF:W3_OFF + W3_ROWS, :]      # (128, 128), cols >= 2 are zero
    b3 = p_ref[B3_OFF:B3_OFF + 1, :]            # (1, 128),   cols >= 2 are zero

    # Layer 1: (TM, 8) @ (8, 128) + bias -> ReLU
    h1 = jnp.dot(x_ref[...], w1, preferred_element_type=jnp.float32)
    h1 = jnp.maximum(h1 + b1, 0.0)
    # Layer 2: (TM, 128) @ (128, 128) + bias -> ReLU
    h2 = jnp.dot(h1, w2, preferred_element_type=jnp.float32)
    h2 = jnp.maximum(h2 + b2, 0.0)
    # Layer 3: (TM, 128) @ (128, 128) + bias  (lane-dense store; real cols = 0..1)
    out = jnp.dot(h2, w3, preferred_element_type=jnp.float32) + b3
    o_ref[...] = out.astype(o_ref.dtype)


def pack_params(params):
    """Pack w1,b1,w2,b2,w3,b3 into one zero-padded (288, 128) f32 buffer."""
    def seg(a, rows):
        buf = jnp.zeros((rows, HIDDEN), jnp.float32)
        return buf.at[: a.shape[0], : a.shape[1]].set(a.astype(jnp.float32))

    return jnp.concatenate(
        [
            seg(params["w1"], W1_ROWS),   # (4,128)   -> rows 0..7
            seg(params["b1"], B1_ROWS),   # (1,128)   -> rows 8..15
            seg(params["w2"], W2_ROWS),   # (128,128) -> rows 16..143
            seg(params["b2"], B2_ROWS),   # (1,128)   -> rows 144..151
            seg(params["w3"], W3_ROWS),   # (128,2)   -> rows 152..279 (zero-padded cols)
            seg(params["b3"], B3_ROWS),   # (1,2)     -> rows 280..287 (zero-padded cols)
        ],
        axis=0,
    )


def net_forward(x, params):
    """x: (B, INPUT_SIZE) f32.  params: dict of w1,b1,w2,b2,w3,b3 in (in, out) layout."""
    B = x.shape[0]

    # Choose a batch tile: pad B to a multiple of 8; cap tile at TM_MAX rows.
    b_pad = _round_up(B, 8)
    if b_pad <= TM_MAX:
        tm = b_pad
    else:
        tm = TM_MAX
        b_pad = _round_up(B, TM_MAX)

    # Zero-pad x to (b_pad, IN_PAD); padded feature cols hit zero rows of w1.
    x_p = jnp.zeros((b_pad, IN_PAD), jnp.float32).at[:B, :INPUT_SIZE].set(
        x.astype(jnp.float32)
    )
    packed = pack_params(params)

    grid_spec = pltpu.PrefetchScalarGridSpec(
        num_scalar_prefetch=0,
        grid=(b_pad // tm,),
        in_specs=[
            pl.BlockSpec((tm, IN_PAD), lambda i: (i, 0)),          # x: tiled over batch
            pl.BlockSpec((PACK_ROWS, HIDDEN), lambda i: (0, 0)),   # params: VMEM-resident
        ],
        out_specs=pl.BlockSpec((tm, HIDDEN), lambda i: (i, 0)),    # lane-dense output
    )

    out_padded = pl.pallas_call(
        mlp_kernel,
        out_shape=jax.ShapeDtypeStruct((b_pad, HIDDEN), jnp.float32),
        grid_spec=grid_spec,
        compiler_params=pltpu.CompilerParams(
            dimension_semantics=("parallel",),
        ),
    )(x_p, packed)

    # Public output: drop batch padding and padded output lanes.
    return out_padded[:B, :OUTPUT_SIZE]


def init_params(key):
    """Deterministic init mimicking nn.Linear (uniform(-1/sqrt(fan_in), +1/sqrt(fan_in)))."""
    keys = jax.random.split(key, 6)

    def linear(kw, kb, fan_in, fan_out):
        bound = 1.0 / jnp.sqrt(jnp.float32(fan_in))
        # stored as (in, out) — equivalent to PyTorch's (out, in) transposed
        w = jax.random.uniform(kw, (fan_in, fan_out), jnp.float32, -bound, bound)
        b = jax.random.uniform(kb, (1, fan_out), jnp.float32, -bound, bound)
        return w, b

    w1, b1 = linear(keys[0], keys[1], INPUT_SIZE, HIDDEN)
    w2, b2 = linear(keys[2], keys[3], HIDDEN, HIDDEN)
    w3, b3 = linear(keys[4], keys[5], HIDDEN, OUTPUT_SIZE)
    return {"w1": w1, "b1": b1, "w2": w2, "b2": b2, "w3": w3, "b3": b3}


def reference_forward(x, p):
    h1 = jnp.maximum(x @ p["w1"] + p["b1"], 0.0)
    h2 = jnp.maximum(h1 @ p["w2"] + p["b2"], 0.0)
    return h2 @ p["w3"] + p["b3"]


if __name__ == "__main__":
    key = jax.random.PRNGKey(0)
    k_params, k_x1, k_x2 = jax.random.split(key, 3)

    params = init_params(k_params)

    # Small-batch check (single grid step).
    batch = 8
    x = jax.random.normal(k_x1, (batch, INPUT_SIZE), jnp.float32)
    out = jax.block_until_ready(net_forward(x, params))
    ref = reference_forward(x, params)
    assert out.shape == (batch, OUTPUT_SIZE), out.shape
    assert jnp.allclose(out, ref, atol=1e-5, rtol=1e-5), "mismatch vs reference (B=8)"

    # Larger-batch check: exercises batch padding and a multi-step parallel grid.
    batch2 = 600
    x2 = jax.random.normal(k_x2, (batch2, INPUT_SIZE), jnp.float32)
    out2 = jax.block_until_ready(net_forward(x2, params))
    ref2 = reference_forward(x2, params)
    assert out2.shape == (batch2, OUTPUT_SIZE), out2.shape
    assert jnp.allclose(out2, ref2, atol=1e-5, rtol=1e-5), "mismatch vs reference (B=600)"

    print("KERNEL_OK")
</pallas_src>

<mosaic_0001>
module attributes {stable_mosaic.version = 11 : i64} {
  func.func @mlp_kernel(%arg0: i32, %arg1: memref<8x8xf32, #tpu.memory_space<vmem>>, %arg2: memref<288x128xf32, #tpu.memory_space<vmem>>, %arg3: memref<8x128xf32, #tpu.memory_space<vmem>>) attributes {dimension_semantics = [#tpu.dimension_semantics<parallel>], iteration_bounds = array<i64: 1>, scalar_prefetch = 0 : i64, scratch_operands = 0 : i64, tpu.core_type = #tpu.core_type<tc>, window_params = [{transform_indices = @transform_0, window_bounds = array<i64: 8, 8>}, {pipeline_mode = #tpu.pipeline_mode<synchronous>, transform_indices = @transform_1, window_bounds = array<i64: 288, 128>}, {transform_indices = @transform_2, window_bounds = array<i64: 8, 128>}]} {
    %c0 = arith.constant 0 : index
    %c0_0 = arith.constant 0 : index
    %0 = vector.load %arg2[%c0, %c0_0] : memref<288x128xf32, #tpu.memory_space<vmem>>, vector<8x128xf32>
    %c8 = arith.constant 8 : index
    %c0_1 = arith.constant 0 : index
    %1 = vector.load %arg2[%c8, %c0_1] : memref<288x128xf32, #tpu.memory_space<vmem>>, vector<1x128xf32>
    %c16 = arith.constant 16 : index
    %c0_2 = arith.constant 0 : index
    %2 = vector.load %arg2[%c16, %c0_2] : memref<288x128xf32, #tpu.memory_space<vmem>>, vector<128x128xf32>
    %c144 = arith.constant 144 : index
    %c0_3 = arith.constant 0 : index
    %3 = vector.load %arg2[%c144, %c0_3] : memref<288x128xf32, #tpu.memory_space<vmem>>, vector<1x128xf32>
    %c152 = arith.constant 152 : index
    %c0_4 = arith.constant 0 : index
    %4 = vector.load %arg2[%c152, %c0_4] : memref<288x128xf32, #tpu.memory_space<vmem>>, vector<128x128xf32>
    %c280 = arith.constant 280 : index
    %c0_5 = arith.constant 0 : index
    %5 = vector.load %arg2[%c280, %c0_5] : memref<288x128xf32, #tpu.memory_space<vmem>>, vector<1x128xf32>
    %c0_6 = arith.constant 0 : index
    %c0_7 = arith.constant 0 : index
    %6 = vector.load %arg1[%c0_6, %c0_7] : memref<8x8xf32, #tpu.memory_space<vmem>>, vector<8x8xf32>
    %cst = arith.constant dense<0.000000e+00> : vector<8x128xf32>
    %7 = tpu.matmul %6, %0, %cst {dimension_numbers = #tpu.dot_dimension_numbers<[1], [0], [0], [1], [0, 0, 1, 1], [], []>} : vector<8x8xf32>, vector<8x128xf32>, vector<8x128xf32> -> vector<8x128xf32>
    %8 = vector.broadcast %1 : vector<1x128xf32> to vector<8x128xf32>
    %9 = arith.addf %7, %8 : vector<8x128xf32>
    %cst_8 = arith.constant 0.000000e+00 : f32
    %10 = vector.broadcast %cst_8 : f32 to vector<8x128xf32>
    %11 = arith.maximumf %9, %10 : vector<8x128xf32>
    %cst_9 = arith.constant dense<0.000000e+00> : vector<8x128xf32>
    %12 = tpu.matmul %11, %2, %cst_9 {dimension_numbers = #tpu.dot_dimension_numbers<[1], [0], [0], [1], [0, 0, 1, 1], [], []>} : vector<8x128xf32>, vector<128x128xf32>, vector<8x128xf32> -> vector<8x128xf32>
    %13 = vector.broadcast %3 : vector<1x128xf32> to vector<8x128xf32>
    %14 = arith.addf %12, %13 : vector<8x128xf32>
    %cst_10 = arith.constant 0.000000e+00 : f32
    %15 = vector.broadcast %cst_10 : f32 to vector<8x128xf32>
    %16 = arith.maximumf %14, %15 : vector<8x128xf32>
    %cst_11 = arith.constant dense<0.000000e+00> : vector<8x128xf32>
    %17 = tpu.matmul %16, %4, %cst_11 {dimension_numbers = #tpu.dot_dimension_numbers<[1], [0], [0], [1], [0, 0, 1, 1], [], []>} : vector<8x128xf32>, vector<128x128xf32>, vector<8x128xf32> -> vector<8x128xf32>
    %18 = vector.broadcast %5 : vector<1x128xf32> to vector<8x128xf32>
    %19 = arith.addf %17, %18 : vector<8x128xf32>
    %c0_12 = arith.constant 0 : index
    %c0_13 = arith.constant 0 : index
    %20 = vector.load %arg3[%c0_12, %c0_13] : memref<8x128xf32, #tpu.memory_space<vmem>>, vector<8x128xf32>
    tpu.vector_store %arg3[%c0_12, %c0_13], %19 {strides = array<i32>} : memref<8x128xf32, #tpu.memory_space<vmem>>, vector<8x128xf32>,
    return
  }
  func.func @transform_0(%arg0: i32) -> (i32, i32) {
    %c0_i32 = arith.constant 0 : i32
    %c0_i32_0 = arith.constant 0 : i32
    return %arg0, %c0_i32 : i32, i32
  }
  func.func @transform_1(%arg0: i32) -> (i32, i32) {
    %c0_i32 = arith.constant 0 : i32
    %c0_i32_0 = arith.constant 0 : i32
    %c0_i32_1 = arith.constant 0 : i32
    return %c0_i32, %c0_i32_0 : i32, i32
  }
  func.func @transform_2(%arg0: i32) -> (i32, i32) {
    %c0_i32 = arith.constant 0 : i32
    %c0_i32_0 = arith.constant 0 : i32
    return %arg0, %c0_i32 : i32, i32
  }
}

</mosaic_0001>

<llo_original>
// kernel: tpu_custom_call.1
$region0: #{tpu_custom_call.1}
  #allocation0 [shape = 'u32[]', space=smem, size = 0x4, offset = 0x4, fixed_abs, tag = 'smem constant byte address 0x4 - core index']
  #allocation1 [shape = 'u32[72,128]{1,0:T(1,128)}', space=vmem, size = 0x9000, scoped, tag = 'internal scratch']
  %s0 = inlined_call_operand.hbm [shape: f32[8,8], index: 0, kind: input, shape index: {}]
  %s1 = inlined_call_operand.hbm [shape: f32[288,128], index: 1, kind: input, shape index: {}]
  %s2 = inlined_call_operand.hbm [shape: f32[8,128], index: 2, kind: output, shape index: {}]
  %s3 = sld [smem:[#allocation0]]
  $region26: #{tpu_custom_call.1} parent=0
    _
  %s5 = ssub.s32 1, %s3
  %s6 = scalar_select 0, %s5, %s3
  $region1: #{tpu_custom_call.1} parent=0
    #allocation2 [shape = 'u8[4096]{0}', space=vmem, size = 0x1000, scoped, tag = 'input window, operand 0, single buffered']
    #allocation3 [shape = 's32[1]{0}', space=sflag, size = 0x4, scoped, tag = 'scoped memory for tpu_custom_call.1']
    #allocation4 [shape = 's32[1]{0}', space=sflag, size = 0x4, scoped, tag = 'scoped memory for tpu_custom_call.1']
    #allocation5 [shape = 'u8[147456]{0}', space=vmem, size = 0x24000, scoped, tag = 'input window, operand 1, single buffered']
    #allocation6 [shape = 's32[1]{0}', space=sflag, size = 0x4, scoped, tag = 'scoped memory for tpu_custom_call.1']
    #allocation7 [shape = 'u8[4096]{0}', space=vmem, size = 0x1000, scoped, tag = 'output window, operand 0, single buffered']
    %7 = vsyncpa [#allocation3], 0
    %8 = vsyncpa [#allocation6], 0
    %9 = vsyncpa [#allocation4], 0
    // Predicated region
    $region2: #{tpu_custom_call.1} parent=1 // pred_check
      _
    $region3: #{tpu_custom_call.1} parent=1 // pred_check_branch
      %11 = sbr.rel (0) target = $region5
    $region4: #{tpu_custom_call.1} parent=1 // pred_region
      %13 = vsyncadd [#allocation3], 0
      %s15 = sshll.u32 %s0, 4
      %s16 = int_to_ptr.hbm [resolvable:$true] %s15
      %s17 = sshll.u32 [#allocation2], 4
      %s18 = int_to_ptr.vmem [resolvable:$true] %s17
      %20 = dma.hbm_to_vmem [thread:$0]  %s16, 128, %s18, [#allocation3]
    $region5: #{tpu_custom_call.1} parent=1 // pred_fallthru
      _
    // Predicated region
    $region6: #{tpu_custom_call.1} parent=1 // pred_check
      _
    $region7: #{tpu_custom_call.1} parent=1 // pred_check_branch
      %22 = sbr.rel (0) target = $region9
    $region8: #{tpu_custom_call.1} parent=1 // pred_region
      %24 = vsyncadd [#allocation6], 0
      %s25 = sshll.u32 %s1, 4
      %s26 = int_to_ptr.hbm [resolvable:$true] %s25
      %s27 = sshll.u32 [#allocation5], 4
      %s28 = int_to_ptr.vmem [resolvable:$true] %s27
      %33 = dma.hbm_to_vmem [thread:$0]  %s26, 4608, %s28, [#allocation6], 128, 128, 8
    $region9: #{tpu_custom_call.1} parent=1 // pred_fallthru
      _
    // Predicated region
    $region10: #{tpu_custom_call.1} parent=1 // pred_check
      _
    $region11: #{tpu_custom_call.1} parent=1 // pred_check_branch
      %35 = sbr.rel (0) target = $region13
    $region12: #{tpu_custom_call.1} parent=1 // pred_region
      %37 = dma.done [#allocation3], 128
    $region13: #{tpu_custom_call.1} parent=1 // pred_fallthru
      _
    // Predicated region
    $region14: #{tpu_custom_call.1} parent=1 // pred_check
      _
    $region15: #{tpu_custom_call.1} parent=1 // pred_check_branch
      %39 = sbr.rel (0) target = $region17
    $region16: #{tpu_custom_call.1} parent=1 // pred_region
      %41 = dma.done [#allocation6], 4608
    $region17: #{tpu_custom_call.1} parent=1 // pred_fallthru
      _
    %v42 = vld [vmem:[#allocation5] sm:$0xff]
    %v43 = vld [vmem:[#allocation5 + $0x8] sm:$0x1]
    %v44 = vld [vmem:[#allocation5 + $0x10] sm:$0xff]
    %v45 = vld [vmem:[#allocation5 + $0x18] sm:$0xff]
    %v46 = vld [vmem:[#allocation5 + $0x20] sm:$0xff]
    %v47 = vld [vmem:[#allocation5 + $0x28] sm:$0xff]
    %v48 = vld [vmem:[#allocation5 + $0x30] sm:$0xff]
    %v49 = vld [vmem:[#allocation5 + $0x38] sm:$0xff]
    %v50 = vld [vmem:[#allocation5 + $0x40] sm:$0xff]
    %v51 = vld [vmem:[#allocation5 + $0x48] sm:$0xff]
    %v52 = vld [vmem:[#allocation5 + $0x50] sm:$0xff]
    %v53 = vld [vmem:[#allocation5 + $0x58] sm:$0xff]
    %v54 = vld [vmem:[#allocation5 + $0x60] sm:$0xff]
    %v55 = vld [vmem:[#allocation5 + $0x68] sm:$0xff]
    %v56 = vld [vmem:[#allocation5 + $0x70] sm:$0xff]
    %v57 = vld [vmem:[#allocation5 + $0x78] sm:$0xff]
    %v58 = vld [vmem:[#allocation5 + $0x80] sm:$0xff]
    %v59 = vld [vmem:[#allocation5 + $0x88] sm:$0xff]
    %v60 = vld [vmem:[#allocation5 + $0x90] sm:$0x1]
    %v61 = vld [vmem:[#allocation5 + $0x98] sm:$0xff]
    %v62 = vld [vmem:[#allocation5 + $0xa0] sm:$0xff]
    %v63 = vld [vmem:[#allocation5 + $0xa8] sm:$0xff]
    %v64 = vld [vmem:[#allocation5 + $0xb0] sm:$0xff]
    %v65 = vld [vmem:[#allocation5 + $0xb8] sm:$0xff]
    %v66 = vld [vmem:[#allocation5 + $0xc0] sm:$0xff]
    %v67 = vld [vmem:[#allocation5 + $0xc8] sm:$0xff]
    %v68 = vld [vmem:[#allocation5 + $0xd0] sm:$0xff]
    %v69 = vld [vmem:[#allocation5 + $0xd8] sm:$0xff]
    %v70 = vld [vmem:[#allocation5 + $0xe0] sm:$0xff]
    %v71 = vld [vmem:[#allocation5 + $0xe8] sm:$0xff]
    %v72 = vld [vmem:[#allocation5 + $0xf0] sm:$0xff]
    %v73 = vld [vmem:[#allocation5 + $0xf8] sm:$0xff]
    %v74 = vld [vmem:[#allocation5 + $0x100] sm:$0xff]
    %v75 = vld [vmem:[#allocation5 + $0x108] sm:$0xff]
    %v76 = vld [vmem:[#allocation5 + $0x110] sm:$0xff]
    %v77 = vld [vmem:[#allocation5 + $0x118] sm:$0x1]
    %v78 = vld [vmem:[#allocation2] sm:$0xff]
    %v79 = vperm.slane %v43, 0
    %vm80 = vcmask 64512
    %v82 = vsel %vm80, %v78, 0
    %84 = vmatpush.msra.mxu0 0.0
    %85 = vmatpush.msra.mxu0 0.0
    %86 = vmatpush.msra.mxu0 0.0
    %87 = vmatpush.msra.mxu0 0.0
    %88 = vmatpush.msra.mxu0 0.0
    %89 = vmatpush.msra.mxu0 0.0
    %90 = vmatpush.msra.mxu0 0.0
    %91 = vmatpush.msra.mxu0 0.0
    %92 = vmatpush.msra.mxu0 0.0
    %93 = vmatpush.msra.mxu0 0.0
    %94 = vmatpush.msra.mxu0 0.0
    %95 = vmatpush.msra.mxu0 0.0
    %96 = vmatpush.msra.mxu0 0.0
    %97 = vmatpush.msra.mxu0 0.0
    %98 = vmatpush.msra.mxu0 0.0
    %99 = vmatpush.msra.mxu0 %v42
    %100 = vmatmul.f32.gmra.mxu0 %v82
    %v101 = vpop.f32.mrf.mxu0
    %v102 = vadd.f32 %v79, %v101
    %103 = vdwg.mxu0
    %v104 = vmax.f32 %v102, 0.0
    %v105 = vperm.slane %v60, 0
    %106 = vmatpush.msra.mxu0 %v59
    %107 = vmatpush.msra.mxu0 %v58
    %108 = vmatpush.msra.mxu0 %v57
    %109 = vmatpush.msra.mxu0 %v56
    %110 = vmatpush.msra.mxu0 %v55
    %111 = vmatpush.msra.mxu0 %v54
    %112 = vmatpush.msra.mxu0 %v53
    %113 = vmatpush.msra.mxu0 %v52
    %114 = vmatpush.msra.mxu0 %v51
    %115 = vmatpush.msra.mxu0 %v50
    %116 = vmatpush.msra.mxu0 %v49
    %117 = vmatpush.msra.mxu0 %v48
    %118 = vmatpush.msra.mxu0 %v47
    %119 = vmatpush.msra.mxu0 %v46
    %120 = vmatpush.msra.mxu0 %v45
    %121 = vmatpush.msra.mxu0 %v44
    %122 = vmatmul.f32.gmra.mxu0 %v104
    %v123 = vpop.f32.mrf.mxu0
    %v124 = vadd.f32 %v105, %v123
    %125 = vdwg.mxu0
    %v126 = vmax.f32 %v124, 0.0
    %v127 = vperm.slane %v77, 0
    %128 = vmatpush.msra.mxu0 %v76
    %129 = vmatpush.msra.mxu0 %v75
    %130 = vmatpush.msra.mxu0 %v74
    %131 = vmatpush.msra.mxu0 %v73
    %132 = vmatpush.msra.mxu0 %v72
    %133 = vmatpush.msra.mxu0 %v71
    %134 = vmatpush.msra.mxu0 %v70
    %135 = vmatpush.msra.mxu0 %v69
    %136 = vmatpush.msra.mxu0 %v68
    %137 = vmatpush.msra.mxu0 %v67
    %138 = vmatpush.msra.mxu0 %v66
    %139 = vmatpush.msra.mxu0 %v65
    %140 = vmatpush.msra.mxu0 %v64
    %141 = vmatpush.msra.mxu0 %v63
    %142 = vmatpush.msra.mxu0 %v62
    %143 = vmatpush.msra.mxu0 %v61
    %144 = vmatmul.f32.gmra.mxu0 %v126
    %v145 = vpop.f32.mrf.mxu0
    %v146 = vadd.f32 %v127, %v145
    %147 = vdwg.mxu0
    %148 = vst [vmem:[#allocation7] sm:$0xff] %v146
    // Predicated region
    $region18: #{tpu_custom_call.1} parent=1 // pred_check
      _
    $region19: #{tpu_custom_call.1} parent=1 // pred_check_branch
      %150 = sbr.rel (0) target = $region21
    $region20: #{tpu_custom_call.1} parent=1 // pred_region
      %152 = vsyncadd [#allocation4], 0
      %s154 = sshll.u32 [#allocation7], 4
      %s155 = int_to_ptr.vmem [resolvable:$true] %s154
      %s156 = sshll.u32 %s2, 4
      %s157 = int_to_ptr.hbm [resolvable:$true] %s156
      %159 = dma.vmem_to_hbm [thread:$0]  %s155, 128, %s157, [#allocation4]
    $region21: #{tpu_custom_call.1} parent=1 // pred_fallthru
      _
    // Predicated region
    $region22: #{tpu_custom_call.1} parent=1 // pred_check
      _
    $region23: #{tpu_custom_call.1} parent=1 // pred_check_branch
      %161 = sbr.rel (0) target = $region25
    $region24: #{tpu_custom_call.1} parent=1 // pred_region
      %163 = dma.done [#allocation4], 128
    $region25: #{tpu_custom_call.1} parent=1 // pred_fallthru
      _
    %164 = vsyncpa [#allocation3], 1
    %165 = vsyncpa [#allocation6], 1
    %166 = vsyncpa [#allocation4], 1

</llo_original>
